<compile_context>
chip_gen: v7x
topology: tpu7x:2x2x1
jax: 0.10.0
libtpu: 0.0.40
codegen_flags: <defaults>
</compile_context>

<pallas_src>
import jax
import jax.numpy as jnp
from jax.experimental import pallas as pl
from jax.experimental.pallas import tpu as pltpu

FIRST_INPUT_FEATURE = 6
FIRST_NEURON = 30
SECOND_NEURON = 30
OUTPUT = 1

# Batch-tile cap (lanes). Per-step VMEM at tb=32768 (bf16 x, f32 out,
# f32/bf16 h1/h2 temporaries) is roughly 600*tb bytes ~ 20 MB < 32 MiB limit.
MAX_TB = 32768
VMEM_LIMIT_BYTES = 32 * 1024 * 1024  # raises v5e's 16 MiB default; no-op on v6e/v7x


def _round_up(n, m):
    return ((n + m - 1) // m) * m


def _mlp_kernel(x_ref, w1_ref, b1_ref, w2_ref, b2_ref, w3_ref, b3_ref, o_ref):
    # x_ref: (6, TB) bf16 -- features on sublanes, batch on lanes (lane-dense).
    x = x_ref[...]

    # L1: (30, 6) @ (6, TB) + (30, 1) -> tanh (bf16 operands, f32 accumulate)
    h1 = jnp.tanh(
        jnp.dot(w1_ref[...], x, preferred_element_type=jnp.float32) + b1_ref[...]
    )
    # L2: (30, 30) @ (30, TB) + (30, 1) -> tanh
    h2 = jnp.tanh(
        jnp.dot(w2_ref[...], h1.astype(jnp.bfloat16),
                preferred_element_type=jnp.float32) + b2_ref[...]
    )
    # L3: (1, 30) @ (30, TB) + (1, 1) -> sigmoid, lane-dense (1, TB) store
    h3 = jnp.dot(w3_ref[...], h2.astype(jnp.bfloat16),
                 preferred_element_type=jnp.float32) + b3_ref[...]
    # sigmoid(z) = 0.5 * (tanh(z/2) + 1): single EUP tanh, no VPU divide.
    o_ref[...] = (0.5 * (jnp.tanh(0.5 * h3) + 1.0)).astype(o_ref.dtype)


def classifier_forward(x, params, *, tb=None):
    """x: (B, 6) float32.

    params: PyTorch-layout weights (out_features, in_features) and biases
    (out_features, 1). Returns (B, 1) float32, matching Classifier.forward.
    """
    B = x.shape[0]
    Bp128 = _round_up(B, 128)
    if tb is None:
        if Bp128 <= 128:
            tb = 128
        else:
            # Keep at least 2 grid steps for large B so v7x's 2 TCs both get
            # work; cap at MAX_TB to amortize per-step pipeline overhead.
            tb = min(MAX_TB, _round_up(pl.cdiv(Bp128, 2), 128))
    Bp = _round_up(B, tb)

    # Batch-on-lanes layout; pad batch up to a multiple of the tile size and
    # stream x as bf16 (the dot operands are bf16 anyway).
    # Padded columns are zeros; their finite garbage outputs are sliced off below.
    # TODO(synk): accept x pre-transposed/pre-cast as (6, B) bf16 from the
    # producer to avoid this extra HBM pass + out-of-pipeline XLA transpose.
    x_t = (
        jnp.zeros((FIRST_INPUT_FEATURE, Bp), jnp.bfloat16)
        .at[:, :B]
        .set(x.T.astype(jnp.bfloat16))
    )

    # bf16 weights (cast once here), f32 biases (added to the f32 accumulator).
    w1 = params["w1"].astype(jnp.bfloat16)
    w2 = params["w2"].astype(jnp.bfloat16)
    w3 = params["w3"].astype(jnp.bfloat16)
    b1, b2, b3 = params["b1"], params["b2"], params["b3"]

    # Weights/biases: full block, constant index map -> VMEM-resident across steps.
    resident = lambda a: pl.BlockSpec(a.shape, lambda i: (0,) * a.ndim)

    out_t = pl.pallas_call(
        _mlp_kernel,
        out_shape=jax.ShapeDtypeStruct((OUTPUT, Bp), jnp.float32),
        grid=(Bp // tb,),
        in_specs=[
            pl.BlockSpec((FIRST_INPUT_FEATURE, tb), lambda i: (0, i)),
            resident(w1), resident(b1),
            resident(w2), resident(b2),
            resident(w3), resident(b3),
        ],
        out_specs=pl.BlockSpec((OUTPUT, tb), lambda i: (0, i)),
        compiler_params=pltpu.CompilerParams(
            dimension_semantics=("parallel",),  # shard batch tiles across v7x's 2 TCs
            vmem_limit_bytes=VMEM_LIMIT_BYTES,
        ),
    )(x_t, w1, b1, w2, b2, w3, b3)

    # (1, Bp) -> (B, 1); drop padded columns.
    return out_t[:, :B].T


def init_params(key):
    """Deterministic init mirroring nn.Linear default (U[-1/sqrt(fan_in), +1/sqrt(fan_in)]).
    Weights stored in PyTorch layout (out_features, in_features); biases (out_features, 1)."""
    ks = jax.random.split(key, 6)

    def linear(kw, kb, fan_in, fan_out):
        bound = 1.0 / jnp.sqrt(jnp.float32(fan_in))
        w = jax.random.uniform(kw, (fan_out, fan_in), jnp.float32, -bound, bound)
        b = jax.random.uniform(kb, (fan_out, 1), jnp.float32, -bound, bound)
        return w, b

    w1, b1 = linear(ks[0], ks[1], FIRST_INPUT_FEATURE, FIRST_NEURON)
    w2, b2 = linear(ks[2], ks[3], FIRST_NEURON, SECOND_NEURON)
    w3, b3 = linear(ks[4], ks[5], SECOND_NEURON, OUTPUT)
    return {"w1": w1, "b1": b1, "w2": w2, "b2": b2, "w3": w3, "b3": b3}


def _reference(x, params):
    ref = jnp.tanh(x @ params["w1"].T + params["b1"].T)
    ref = jnp.tanh(ref @ params["w2"].T + params["b2"].T)
    return jax.nn.sigmoid(ref @ params["w3"].T + params["b3"].T)


if __name__ == "__main__":
    key = jax.random.PRNGKey(0)
    k_params, k_x1, k_x2 = jax.random.split(key, 3)

    params = init_params(k_params)

    # Small batch (padded internally to one 128-wide lane tile).
    B1 = 8
    x1 = jax.random.normal(k_x1, (B1, FIRST_INPUT_FEATURE), jnp.float32)
    out1 = jax.block_until_ready(classifier_forward(x1, params))

    # Multi-tile batch (exercises the >1-step grid / parallel batch axis).
    B2 = 300
    x2 = jax.random.normal(k_x2, (B2, FIRST_INPUT_FEATURE), jnp.float32)
    out2 = jax.block_until_ready(classifier_forward(x2, params))

    # Sanity check against a pure-f32 JAX reference of the same math.
    # Tolerance relaxed vs the all-f32 kernel: dot operands are bf16 now.
    ref1 = _reference(x1, params)
    ref2 = _reference(x2, params)
    assert out1.shape == (B1, OUTPUT)
    assert out2.shape == (B2, OUTPUT)
    assert jnp.allclose(out1, ref1, atol=2e-2, rtol=2e-2)
    assert jnp.allclose(out2, ref2, atol=2e-2, rtol=2e-2)

    print("KERNEL_OK")
</pallas_src>

<mosaic_0001>
module attributes {stable_mosaic.version = 11 : i64} {
  func.func @_mlp_kernel(%arg0: i32, %arg1: memref<6x128xbf16, #tpu.memory_space<vmem>>, %arg2: memref<30x6xbf16, #tpu.memory_space<vmem>>, %arg3: memref<30x1xf32, #tpu.memory_space<vmem>>, %arg4: memref<30x30xbf16, #tpu.memory_space<vmem>>, %arg5: memref<30x1xf32, #tpu.memory_space<vmem>>, %arg6: memref<1x30xbf16, #tpu.memory_space<vmem>>, %arg7: memref<1x1xf32, #tpu.memory_space<vmem>>, %arg8: memref<1x128xf32, #tpu.memory_space<vmem>>) attributes {dimension_semantics = [#tpu.dimension_semantics<parallel>], iteration_bounds = array<i64: 1>, scalar_prefetch = 0 : i64, scratch_operands = 0 : i64, tpu.core_type = #tpu.core_type<tc>, window_params = [{transform_indices = @transform_0, window_bounds = array<i64: 6, 128>}, {pipeline_mode = #tpu.pipeline_mode<synchronous>, transform_indices = @transform_1, window_bounds = array<i64: 30, 6>}, {pipeline_mode = #tpu.pipeline_mode<synchronous>, transform_indices = @transform_2, window_bounds = array<i64: 30, 1>}, {pipeline_mode = #tpu.pipeline_mode<synchronous>, transform_indices = @transform_3, window_bounds = array<i64: 30, 30>}, {pipeline_mode = #tpu.pipeline_mode<synchronous>, transform_indices = @transform_4, window_bounds = array<i64: 30, 1>}, {pipeline_mode = #tpu.pipeline_mode<synchronous>, transform_indices = @transform_5, window_bounds = array<i64: 1, 30>}, {pipeline_mode = #tpu.pipeline_mode<synchronous>, transform_indices = @transform_6, window_bounds = array<i64: 1, 1>}, {transform_indices = @transform_7, window_bounds = array<i64: 1, 128>}]} {
    %c0 = arith.constant 0 : index
    %c0_0 = arith.constant 0 : index
    %0 = vector.load %arg1[%c0, %c0_0] : memref<6x128xbf16, #tpu.memory_space<vmem>>, vector<6x128xbf16>
    %c0_1 = arith.constant 0 : index
    %c0_2 = arith.constant 0 : index
    %1 = vector.load %arg2[%c0_1, %c0_2] : memref<30x6xbf16, #tpu.memory_space<vmem>>, vector<30x6xbf16>
    %cst = arith.constant dense<0.000000e+00> : vector<30x128xf32>
    %2 = tpu.matmul %1, %0, %cst {dimension_numbers = #tpu.dot_dimension_numbers<[1], [0], [0], [1], [0, 0, 1, 1], [], []>} : vector<30x6xbf16>, vector<6x128xbf16>, vector<30x128xf32> -> vector<30x128xf32>
    %c0_3 = arith.constant 0 : index
    %c0_4 = arith.constant 0 : index
    %3 = vector.load %arg3[%c0_3, %c0_4] : memref<30x1xf32, #tpu.memory_space<vmem>>, vector<30x1xf32>
    %4 = vector.broadcast %3 : vector<30x1xf32> to vector<30x128xf32>
    %5 = arith.addf %2, %4 : vector<30x128xf32>
    %6 = math.tanh %5 : vector<30x128xf32>
    %c0_5 = arith.constant 0 : index
    %c0_6 = arith.constant 0 : index
    %7 = vector.load %arg4[%c0_5, %c0_6] : memref<30x30xbf16, #tpu.memory_space<vmem>>, vector<30x30xbf16>
    %8 = arith.truncf %6 : vector<30x128xf32> to vector<30x128xbf16>
    %cst_7 = arith.constant dense<0.000000e+00> : vector<30x128xf32>
    %9 = tpu.matmul %7, %8, %cst_7 {dimension_numbers = #tpu.dot_dimension_numbers<[1], [0], [0], [1], [0, 0, 1, 1], [], []>} : vector<30x30xbf16>, vector<30x128xbf16>, vector<30x128xf32> -> vector<30x128xf32>
    %c0_8 = arith.constant 0 : index
    %c0_9 = arith.constant 0 : index
    %10 = vector.load %arg5[%c0_8, %c0_9] : memref<30x1xf32, #tpu.memory_space<vmem>>, vector<30x1xf32>
    %11 = vector.broadcast %10 : vector<30x1xf32> to vector<30x128xf32>
    %12 = arith.addf %9, %11 : vector<30x128xf32>
    %13 = math.tanh %12 : vector<30x128xf32>
    %c0_10 = arith.constant 0 : index
    %c0_11 = arith.constant 0 : index
    %14 = vector.load %arg6[%c0_10, %c0_11] : memref<1x30xbf16, #tpu.memory_space<vmem>>, vector<1x30xbf16>
    %15 = arith.truncf %13 : vector<30x128xf32> to vector<30x128xbf16>
    %cst_12 = arith.constant dense<0.000000e+00> : vector<1x128xf32>
    %16 = tpu.matmul %14, %15, %cst_12 {dimension_numbers = #tpu.dot_dimension_numbers<[1], [0], [0], [1], [0, 0, 1, 1], [], []>} : vector<1x30xbf16>, vector<30x128xbf16>, vector<1x128xf32> -> vector<1x128xf32>
    %c0_13 = arith.constant 0 : index
    %c0_14 = arith.constant 0 : index
    %17 = vector.load %arg7[%c0_13, %c0_14] : memref<1x1xf32, #tpu.memory_space<vmem>>, vector<1x1xf32>
    %18 = vector.broadcast %17 : vector<1x1xf32> to vector<1x128xf32>
    %19 = arith.addf %16, %18 : vector<1x128xf32>
    %cst_15 = arith.constant 5.000000e-01 : f32
    %20 = vector.broadcast %cst_15 : f32 to vector<1x128xf32>
    %21 = arith.mulf %20, %19 : vector<1x128xf32>
    %22 = math.tanh %21 : vector<1x128xf32>
    %cst_16 = arith.constant 1.000000e+00 : f32
    %23 = vector.broadcast %cst_16 : f32 to vector<1x128xf32>
    %24 = arith.addf %22, %23 : vector<1x128xf32>
    %cst_17 = arith.constant 5.000000e-01 : f32
    %25 = vector.broadcast %cst_17 : f32 to vector<1x128xf32>
    %26 = arith.mulf %25, %24 : vector<1x128xf32>
    %c0_18 = arith.constant 0 : index
    %c0_19 = arith.constant 0 : index
    %27 = vector.load %arg8[%c0_18, %c0_19] : memref<1x128xf32, #tpu.memory_space<vmem>>, vector<1x128xf32>
    tpu.vector_store %arg8[%c0_18, %c0_19], %26 {strides = array<i32>} : memref<1x128xf32, #tpu.memory_space<vmem>>, vector<1x128xf32>,
    return
  }
  func.func @transform_0(%arg0: i32) -> (i32, i32) {
    %c0_i32 = arith.constant 0 : i32
    %c0_i32_0 = arith.constant 0 : i32
    return %c0_i32, %arg0 : i32, i32
  }
  func.func @transform_1(%arg0: i32) -> (i32, i32) {
    %c0_i32 = arith.constant 0 : i32
    %c0_i32_0 = arith.constant 0 : i32
    %c0_i32_1 = arith.constant 0 : i32
    return %c0_i32, %c0_i32_0 : i32, i32
  }
  func.func @transform_2(%arg0: i32) -> (i32, i32) {
    %c0_i32 = arith.constant 0 : i32
    %c0_i32_0 = arith.constant 0 : i32
    %c0_i32_1 = arith.constant 0 : i32
    return %c0_i32, %c0_i32_0 : i32, i32
  }
  func.func @transform_3(%arg0: i32) -> (i32, i32) {
    %c0_i32 = arith.constant 0 : i32
    %c0_i32_0 = arith.constant 0 : i32
    %c0_i32_1 = arith.constant 0 : i32
    return %c0_i32, %c0_i32_0 : i32, i32
  }
  func.func @transform_4(%arg0: i32) -> (i32, i32) {
    %c0_i32 = arith.constant 0 : i32
    %c0_i32_0 = arith.constant 0 : i32
    %c0_i32_1 = arith.constant 0 : i32
    return %c0_i32, %c0_i32_0 : i32, i32
  }
  func.func @transform_5(%arg0: i32) -> (i32, i32) {
    %c0_i32 = arith.constant 0 : i32
    %c0_i32_0 = arith.constant 0 : i32
    %c0_i32_1 = arith.constant 0 : i32
    return %c0_i32, %c0_i32_0 : i32, i32
  }
  func.func @transform_6(%arg0: i32) -> (i32, i32) {
    %c0_i32 = arith.constant 0 : i32
    %c0_i32_0 = arith.constant 0 : i32
    %c0_i32_1 = arith.constant 0 : i32
    return %c0_i32, %c0_i32_0 : i32, i32
  }
  func.func @transform_7(%arg0: i32) -> (i32, i32) {
    %c0_i32 = arith.constant 0 : i32
    %c0_i32_0 = arith.constant 0 : i32
    return %c0_i32, %arg0 : i32, i32
  }
}

</mosaic_0001>

<llo_original>
// kernel: tpu_custom_call.1
$region0: #{tpu_custom_call.1}
  #allocation0 [shape = 'u32[]', space=smem, size = 0x4, offset = 0x4, fixed_abs, tag = 'smem constant byte address 0x4 - core index']
  #allocation1 [shape = 'u32[144,128]{1,0:T(1,128)}', space=vmem, size = 0x12000, scoped, tag = 'internal scratch']
  #allocation2 [shape = 'f32[1,1]{1,0:T(1,128)S(1)}', space=vmem, size = 0x200, scoped, tag = 'scoped memory for tpu_custom_call.1']
  %s0 = inlined_call_operand.vmem [shape: bf16[6,128], index: 0, kind: input, shape index: {}]
  %s1 = inlined_call_operand.vmem [shape: bf16[30,6], index: 1, kind: input, shape index: {}]
  %s2 = inlined_call_operand.vmem [shape: f32[30,1], index: 2, kind: input, shape index: {}]
  %s3 = inlined_call_operand.vmem [shape: bf16[30,30], index: 3, kind: input, shape index: {}]
  %s4 = inlined_call_operand.vmem [shape: f32[30,1], index: 4, kind: input, shape index: {}]
  %s5 = inlined_call_operand.vmem [shape: bf16[1,30], index: 5, kind: input, shape index: {}]
  %s6 = inlined_call_operand.<no memory space> [shape: f32[1,1], index: 6, kind: input, shape index: {}]
  %s7 = inlined_call_operand.hbm [shape: f32[1,128], index: 7, kind: output, shape index: {}]
  %s8 = sld [smem:[#allocation0]]
  $region38: #{tpu_custom_call.1} parent=0
    _
  %s10 = ssub.s32 1, %s8
  %s11 = scalar_select 0, %s10, %s8
  %v12 = vstv %s6
  %13 = vst [vmem:[#allocation2] sm:$0x1] %v12
  $region1: #{tpu_custom_call.1} parent=0
    #allocation3 [shape = 'u8[512]{0}', space=vmem, size = 0x400, scoped, tag = 'output window, operand 0, single buffered']
    #allocation4 [shape = 's32[1]{0}', space=sflag, size = 0x4, scoped, tag = 'scoped memory for tpu_custom_call.1']
    %14 = vsyncpa [#allocation4], 0
    // Predicated region
    $region2: #{tpu_custom_call.1} parent=1 // pred_check
      _
    $region3: #{tpu_custom_call.1} parent=1 // pred_check_branch
      %16 = sbr.rel (0) target = $region5
    $region4: #{tpu_custom_call.1} parent=1 // pred_region
      _
    $region5: #{tpu_custom_call.1} parent=1 // pred_fallthru
      _
    // Predicated region
    $region6: #{tpu_custom_call.1} parent=1 // pred_check
      _
    $region7: #{tpu_custom_call.1} parent=1 // pred_check_branch
      %18 = sbr.rel (0) target = $region9
    $region8: #{tpu_custom_call.1} parent=1 // pred_region
      _
    $region9: #{tpu_custom_call.1} parent=1 // pred_fallthru
      _
    // Predicated region
    $region10: #{tpu_custom_call.1} parent=1 // pred_check
      _
    $region11: #{tpu_custom_call.1} parent=1 // pred_check_branch
      %20 = sbr.rel (0) target = $region13
    $region12: #{tpu_custom_call.1} parent=1 // pred_region
      _
    $region13: #{tpu_custom_call.1} parent=1 // pred_fallthru
      _
    // Predicated region
    $region14: #{tpu_custom_call.1} parent=1 // pred_check
      _
    $region15: #{tpu_custom_call.1} parent=1 // pred_check_branch
      %22 = sbr.rel (0) target = $region17
    $region16: #{tpu_custom_call.1} parent=1 // pred_region
      _
    $region17: #{tpu_custom_call.1} parent=1 // pred_fallthru
      _
    // Predicated region
    $region18: #{tpu_custom_call.1} parent=1 // pred_check
      _
    $region19: #{tpu_custom_call.1} parent=1 // pred_check_branch
      %24 = sbr.rel (0) target = $region21
    $region20: #{tpu_custom_call.1} parent=1 // pred_region
      _
    $region21: #{tpu_custom_call.1} parent=1 // pred_fallthru
      _
    // Predicated region
    $region22: #{tpu_custom_call.1} parent=1 // pred_check
      _
    $region23: #{tpu_custom_call.1} parent=1 // pred_check_branch
      %26 = sbr.rel (0) target = $region25
    $region24: #{tpu_custom_call.1} parent=1 // pred_region
      _
    $region25: #{tpu_custom_call.1} parent=1 // pred_fallthru
      _
    // Predicated region
    $region26: #{tpu_custom_call.1} parent=1 // pred_check
      _
    $region27: #{tpu_custom_call.1} parent=1 // pred_check_branch
      %28 = sbr.rel (0) target = $region29
    $region28: #{tpu_custom_call.1} parent=1 // pred_region
      _
    $region29: #{tpu_custom_call.1} parent=1 // pred_fallthru
      _
    %v30 = vld [vmem:[%s0] sm:$0x7]
    %v31 = vld [vmem:[%s1] sm:$0xf]
    %v32 = vld [vmem:[%s1 + $0x4] sm:$0xf]
    %v33 = vld [vmem:[%s1 + $0x8] sm:$0xf]
    %v34 = vld [vmem:[%s1 + $0xc] sm:$0x7]
    %v35 = vld [vmem:[%s2] sm:$0xff]
    %v36 = vld [vmem:[%s2 + $0x8] sm:$0xff]
    %v37 = vld [vmem:[%s2 + $0x10] sm:$0xff]
    %v38 = vld [vmem:[%s2 + $0x18] sm:$0x3f]
    %40 = vset.pattern.permute.xlu0 0
    %41 = vperm.xlu0 %40, %v35
    %v42 = vpop.permute.xlu0 %41
    %45 = vset.pattern.permute.xlu0 0
    %46 = vperm.xlu0 %45, %v36
    %v47 = vpop.permute.xlu0 %46
    %50 = vset.pattern.permute.xlu0 0
    %51 = vperm.xlu0 %50, %v37
    %v52 = vpop.permute.xlu0 %51
    %55 = vset.pattern.permute.xlu0 0
    %56 = vperm.xlu0 %55, %v38
    %v57 = vpop.permute.xlu0 %56
    %v63 = vunpack.c.l.b16 %v31
    %v64 = vunpack.c.l.b16 %v32
    %v65 = vunpack.c.l.b16 %v33
    %v66 = vunpack.c.l.b16 %v34
    %v67 = vpack.c.b16 %v64, %v63
    %v68 = vpack.c.b16 %v66, %v65
    %vm69 = vcmask 48128
    %v71 = vsel %vm69, %v67, 0
    %v74 = vsel %vm69, %v68, 0
    %vm76 = vcmask 1042432
    %v78 = vsel %vm76, %v30, 0
    %80 = vmatprep.subr.bf16.mxu0 0
    %81 = vmatpush1.bf16.msra.mxu0 %v78
    %82 = vmatprep.subr.bf16.mxu0 0
    %83 = vmatpush1.bf16.msra.mxu0 0
    %84 = vmatprep.subr.bf16.mxu0 0
    %85 = vmatpush1.bf16.msra.mxu0 0
    %86 = vmatprep.subr.bf16.mxu0 0
    %87 = vmatpush1.bf16.msra.mxu0 0
    %88 = vmatprep.subr.bf16.mxu0 0
    %89 = vmatpush1.bf16.msra.mxu0 0
    %90 = vmatprep.subr.bf16.mxu0 0
    %91 = vmatpush1.bf16.msra.mxu0 0
    %92 = vmatprep.subr.bf16.mxu0 0
    %93 = vmatpush1.bf16.msra.mxu0 0
    %94 = vmatprep.subr.bf16.mxu0 0
    %95 = vmatpush1.bf16.msra.mxu0 0
    %96 = vmatprep.subr.bf16.mxu0 0
    %97 = vmatpush1.bf16.msra.mxu0 0
    %98 = vmatprep.subr.bf16.mxu0 0
    %99 = vmatpush1.bf16.msra.mxu0 0
    %100 = vmatprep.subr.bf16.mxu0 0
    %101 = vmatpush1.bf16.msra.mxu0 0
    %102 = vmatprep.subr.bf16.mxu0 0
    %103 = vmatpush1.bf16.msra.mxu0 0
    %104 = vmatprep.subr.bf16.mxu0 0
    %105 = vmatpush1.bf16.msra.mxu0 0
    %106 = vmatprep.subr.bf16.mxu0 0
    %107 = vmatpush1.bf16.msra.mxu0 0
    %108 = vmatprep.subr.bf16.mxu0 0
    %109 = vmatpush1.bf16.msra.mxu0 0
    %110 = vmatprep.subr.bf16.mxu0 0
    %111 = vmatpush1.bf16.msra.mxu0 0
    %112 = vmatprep.mubr.bf16.mxu0 0
    %113 = vmatmul.mubr.bf16.gmra.mrb[0].mxu0 %v71
    %v114 = vpop.f32.mrb[0].mxu0
    %v115 = vadd.f32 %v42, %v114
    %v116 = vpop.f32.mrb[0].mxu0
    %v117 = vpop.f32.mrb[0].mxu0
    %v118 = vadd.f32 %v47, %v117
    %v119 = vpop.f32.mrb[0].mxu0
    %120 = vmatprep.mubr.bf16.mxu0 0
    %121 = vmatmul.mubr.bf16.gmra.mrb[0].mxu0 %v74
    %v122 = vpop.f32.mrb[0].mxu0
    %v123 = vadd.f32 %v52, %v122
    %v124 = vpop.f32.mrb[0].mxu0
    %v125 = vpop.f32.mrb[0].mxu0
    %v126 = vadd.f32 %v57, %v125
    %v127 = vpop.f32.mrb[0].mxu0
    %128 = vdwg.mxu0
    %v129 = vtanh.pop %v115
    %v130 = vtanh.pop %v118
    %v131 = vtanh.pop %v123
    %v132 = vtanh.pop %v126
    %v133 = vld [vmem:[%s3] sm:$0xf]
    %v134 = vld [vmem:[%s3 + $0x4] sm:$0xf]
    %v135 = vld [vmem:[%s3 + $0x8] sm:$0xf]
    %v136 = vld [vmem:[%s3 + $0xc] sm:$0x7]
    %v137 = vpack.c.bf16 %v130, %v129
    %v138 = vpack.c.bf16 %v132, %v131
    %v139 = vld [vmem:[%s4] sm:$0xff]
    %v140 = vld [vmem:[%s4 + $0x8] sm:$0xff]
    %v141 = vld [vmem:[%s4 + $0x10] sm:$0xff]
    %v142 = vld [vmem:[%s4 + $0x18] sm:$0x3f]
    %144 = vset.pattern.permute.xlu0 0
    %145 = vperm.xlu0 %144, %v139
    %v146 = vpop.permute.xlu0 %145
    %149 = vset.pattern.permute.xlu0 0
    %150 = vperm.xlu0 %149, %v140
    %v151 = vpop.permute.xlu0 %150
    %154 = vset.pattern.permute.xlu0 0
    %155 = vperm.xlu0 %154, %v141
    %v156 = vpop.permute.xlu0 %155
    %159 = vset.pattern.permute.xlu0 0
    %160 = vperm.xlu0 %159, %v142
    %v161 = vpop.permute.xlu0 %160
    %v167 = vunpack.c.l.b16 %v133
    %v168 = vunpack.c.l.b16 %v134
    %v169 = vunpack.c.l.b16 %v135
    %v170 = vunpack.c.l.b16 %v136
    %v171 = vpack.c.b16 %v168, %v167
    %v172 = vpack.c.b16 %v170, %v169
    %vm173 = vcmask 244736
    %v175 = vsel %vm173, %v171, 0
    %v178 = vsel %vm173, %v172, 0
    %vm180 = vcmask 1046528
    %v182 = vsel %vm180, %v138, 0
    %184 = vmatprep.subr.bf16.mxu0 0
    %185 = vmatpush1.bf16.msra.mxu0 %v137
    %186 = vmatprep.subr.bf16.mxu0 0
    %187 = vmatpush1.bf16.msra.mxu0 %v182
    %188 = vmatprep.subr.bf16.mxu0 0
    %189 = vmatpush1.bf16.msra.mxu0 0
    %190 = vmatprep.subr.bf16.mxu0 0
    %191 = vmatpush1.bf16.msra.mxu0 0
    %192 = vmatprep.subr.bf16.mxu0 0
    %193 = vmatpush1.bf16.msra.mxu0 0
    %194 = vmatprep.subr.bf16.mxu0 0
    %195 = vmatpush1.bf16.msra.mxu0 0
    %196 = vmatprep.subr.bf16.mxu0 0
    %197 = vmatpush1.bf16.msra.mxu0 0
    %198 = vmatprep.subr.bf16.mxu0 0
    %199 = vmatpush1.bf16.msra.mxu0 0
    %200 = vmatprep.subr.bf16.mxu0 0
    %201 = vmatpush1.bf16.msra.mxu0 0
    %202 = vmatprep.subr.bf16.mxu0 0
    %203 = vmatpush1.bf16.msra.mxu0 0
    %204 = vmatprep.subr.bf16.mxu0 0
    %205 = vmatpush1.bf16.msra.mxu0 0
    %206 = vmatprep.subr.bf16.mxu0 0
    %207 = vmatpush1.bf16.msra.mxu0 0
    %208 = vmatprep.subr.bf16.mxu0 0
    %209 = vmatpush1.bf16.msra.mxu0 0
    %210 = vmatprep.subr.bf16.mxu0 0
    %211 = vmatpush1.bf16.msra.mxu0 0
    %212 = vmatprep.subr.bf16.mxu0 0
    %213 = vmatpush1.bf16.msra.mxu0 0
    %214 = vmatprep.subr.bf16.mxu0 0
    %215 = vmatpush1.bf16.msra.mxu0 0
    %216 = vmatprep.mubr.bf16.mxu0 0
    %217 = vmatmul.mubr.bf16.gmra.mrb[0].mxu0 %v175
    %v218 = vpop.f32.mrb[0].mxu0
    %v219 = vadd.f32 %v146, %v218
    %v220 = vpop.f32.mrb[0].mxu0
    %v221 = vpop.f32.mrb[0].mxu0
    %v222 = vadd.f32 %v151, %v221
    %v223 = vpop.f32.mrb[0].mxu0
    %224 = vmatprep.mubr.bf16.mxu0 0
    %225 = vmatmul.mubr.bf16.gmra.mrb[0].mxu0 %v178
    %v226 = vpop.f32.mrb[0].mxu0
    %v227 = vadd.f32 %v156, %v226
    %v228 = vpop.f32.mrb[0].mxu0
    %v229 = vpop.f32.mrb[0].mxu0
    %v230 = vadd.f32 %v161, %v229
    %v231 = vpop.f32.mrb[0].mxu0
    %232 = vdwg.mxu0
    %v233 = vtanh.pop %v219
    %v234 = vtanh.pop %v222
    %v235 = vtanh.pop %v227
    %v236 = vtanh.pop %v230
    %v237 = vld [vmem:[%s5] sm:$0x1]
    %v238 = vpack.c.bf16 %v234, %v233
    %v239 = vpack.c.bf16 %v236, %v235
    %v240 = vld [vmem:[#allocation2] sm:$0x1]
    %242 = vset.pattern.permute.xlu0 0
    %243 = vperm.xlu0 %242, %v240
    %v244 = vpop.permute.xlu0 %243
    %v246 = vlaneseq
    %v247 = vshrl.u32 %v246, 7
    %v248 = vsub.s32 0, %v247
    %v249 = vrot.slane %v244, %v248
    %v251 = vsel %vm173, %v237, 0
    %v254 = vsel %vm180, %v239, 0
    %256 = vmatprep.subr.bf16.mxu0 0
    %257 = vmatpush1.bf16.msra.mxu0 %v238
    %258 = vmatprep.subr.bf16.mxu0 0
    %259 = vmatpush1.bf16.msra.mxu0 %v254
    %260 = vmatprep.subr.bf16.mxu0 0
    %261 = vmatpush1.bf16.msra.mxu0 0
    %262 = vmatprep.subr.bf16.mxu0 0
    %263 = vmatpush1.bf16.msra.mxu0 0
    %264 = vmatprep.subr.bf16.mxu0 0
    %265 = vmatpush1.bf16.msra.mxu0 0
    %266 = vmatprep.subr.bf16.mxu0 0
    %267 = vmatpush1.bf16.msra.mxu0 0
    %268 = vmatprep.subr.bf16.mxu0 0
    %269 = vmatpush1.bf16.msra.mxu0 0
    %270 = vmatprep.subr.bf16.mxu0 0
    %271 = vmatpush1.bf16.msra.mxu0 0
    %272 = vmatprep.subr.bf16.mxu0 0
    %273 = vmatpush1.bf16.msra.mxu0 0
    %274 = vmatprep.subr.bf16.mxu0 0
    %275 = vmatpush1.bf16.msra.mxu0 0
    %276 = vmatprep.subr.bf16.mxu0 0
    %277 = vmatpush1.bf16.msra.mxu0 0
    %278 = vmatprep.subr.bf16.mxu0 0
    %279 = vmatpush1.bf16.msra.mxu0 0
    %280 = vmatprep.subr.bf16.mxu0 0
    %281 = vmatpush1.bf16.msra.mxu0 0
    %282 = vmatprep.subr.bf16.mxu0 0
    %283 = vmatpush1.bf16.msra.mxu0 0
    %284 = vmatprep.subr.bf16.mxu0 0
    %285 = vmatpush1.bf16.msra.mxu0 0
    %286 = vmatprep.subr.bf16.mxu0 0
    %287 = vmatpush1.bf16.msra.mxu0 0
    %288 = vmatprep.mubr.bf16.mxu0 0
    %289 = vmatmul.mubr.bf16.gmra.mrb[0].mxu0 %v251
    %v290 = vpop.f32.mrb[0].mxu0
    %v291 = vadd.f32 %v249, %v290
    %v292 = vpop.f32.mrb[0].mxu0
    %v293 = vpop.f32.mrb[0].mxu0
    %v294 = vpop.f32.mrb[0].mxu0
    %295 = vdwg.mxu0
    %v296 = vmul.f32 %v291, 0.5
    %v297 = vtanh.pop %v296
    %v298 = vadd.f32 %v297, 1.0
    %v299 = vmul.f32 %v298, 0.5
    %300 = vst [vmem:[#allocation3] sm:$0x1] %v299
    // Predicated region
    $region30: #{tpu_custom_call.1} parent=1 // pred_check
      _
    $region31: #{tpu_custom_call.1} parent=1 // pred_check_branch
      %302 = sbr.rel (0) target = $region33
    $region32: #{tpu_custom_call.1} parent=1 // pred_region
      %s304 = ssub.s32 16, 16
      %305 = vsyncadd [#allocation4], %s304
      %s307 = sshll.u32 [#allocation3], 4
      %s308 = int_to_ptr.vmem [resolvable:$true] %s307
      %310 = dma.vmem_to_hbm [thread:$0]  %s308, 16, %s7, [#allocation4]
    $region33: #{tpu_custom_call.1} parent=1 // pred_fallthru
      _
    // Predicated region
    $region34: #{tpu_custom_call.1} parent=1 // pred_check
      _
    $region35: #{tpu_custom_call.1} parent=1 // pred_check_branch
      %312 = sbr.rel (0) target = $region37
    $region36: #{tpu_custom_call.1} parent=1 // pred_region
      %313 = dma.done [#allocation4], 16
    $region37: #{tpu_custom_call.1} parent=1 // pred_fallthru
      _
    %314 = vsyncpa [#allocation4], 1

</llo_original>
